<compile_context>
chip_gen: v5e
topology: v5e:2x2
jax: 0.10.0
libtpu: 0.0.40
codegen_flags: <defaults>
</compile_context>

<pallas_src>
import functools
import math

import jax
import jax.numpy as jnp
from jax.experimental import pallas as pl
from jax.experimental.pallas import tpu as pltpu

_CHUNK = 128  # lane-group width of the in-kernel accumulation


def _round_up(x, m):
    return ((x + m - 1) // m) * m


def _cdiv(a, b):
    return -(-a // b)


def _vmem_capacity_bytes():
    try:
        return int(pltpu.get_tpu_info().vmem_capacity_bytes)
    except Exception:
        return 64 << 20  # conservative fallback (v7x per-core VMEM)


def _choose_tile_b(batch):
    # Largest power-of-two in [8, 128] that keeps batch-padding waste <= 12.5%.
    best = 8
    for cand in (16, 32, 64, 128):
        if cand <= batch and (_round_up(batch, cand) - batch) * 8 <= batch:
            best = cand
    # Prefer >= 2 programs on the "parallel" batch axis (v7x megacore) as long
    # as the tile stays sublane-full.  tile_n is chosen afterwards, so the
    # per-step HBM bytes are unchanged by this shrink.
    while best > 8 and _cdiv(batch, best) < 2:
        best //= 2
    return best


def _choose_tiles(batch, n_feat, x_bytes, y_bytes, vmem_cap):
    tile_b = _choose_tile_b(batch)
    big_vmem = vmem_cap >= (100 << 20)            # v5e / v6e (128 MiB) vs v7x (64 MiB)
    target_step_bytes = (8 << 20) if big_vmem else (4 << 20)
    per_col = tile_b * (x_bytes + y_bytes)
    tile_n = max(_CHUNK, (target_step_bytes // per_col) // _CHUNK * _CHUNK)
    # Bound the unrolled chunk loop (code size / register pressure): at most
    # ~512 vreg-rows of work per pass.
    max_chunks = max(1, 4096 // tile_b)
    tile_n = min(tile_n, max_chunks * _CHUNK, _round_up(n_feat, _CHUNK))
    return tile_b, tile_n


def _bce_reduced_kernel(x_ref, y_ref, o_ref, acc_ref, *,
                        n_valid, tile_n, grid_n, need_mask):
    k = pl.program_id(1)  # feature (reduction) axis

    @pl.when(k == 0)
    def _init():
        acc_ref[...] = jnp.zeros_like(acc_ref)

    n_chunks = tile_n // _CHUNK
    inv_n = 1.0 / float(n_valid)

    def accumulate(masked):
        # Per-chunk BCE + immediate lane-dense fold: never materializes the
        # full (tile_b, tile_n) loss tile.
        psum = None
        for c in range(n_chunks):
            sl = slice(c * _CHUNK, (c + 1) * _CHUNK)
            x = x_ref[:, sl].astype(jnp.float32)
            y = y_ref[:, sl].astype(jnp.float32)
            # Numerically stable BCE-with-logits (matches torch
            # BCEWithLogitsLoss, reduction='none'):
            #   max(x, 0) - x*y + log(1 + exp(-|x|))
            loss = jnp.maximum(x, 0.0) - x * y + jnp.log1p(jnp.exp(-jnp.abs(x)))
            if masked:
                # Zero padded / out-of-bounds feature columns so the sum (and
                # hence the mean with denominator n_valid) stays exact even
                # though the tail block's OOB lanes hold undefined data.
                col = (k * tile_n + c * _CHUNK
                       + jax.lax.broadcasted_iota(jnp.int32, loss.shape, 1))
                loss = jnp.where(col < n_valid, loss, 0.0)
            psum = loss if psum is None else psum + loss
        acc_ref[...] += psum

    if not need_mask:
        accumulate(False)
    elif grid_n == 1:
        accumulate(True)
    else:
        @pl.when(k < grid_n - 1)
        def _interior():
            accumulate(False)

        @pl.when(k == grid_n - 1)
        def _tail():
            accumulate(True)

    @pl.when(k == grid_n - 1)
    def _finalize():
        row_sum = jnp.sum(acc_ref[...], axis=1, keepdims=True)  # single XLU reduce
        o_ref[...] = (row_sum * inv_n).astype(o_ref.dtype)


@jax.jit
def reduced_per_sample_bce(logits, targets):
    """logits, targets: (B, ...) arrays.  Returns (B, 1, ..., 1) float32."""
    if logits.ndim <= 1:
        # Degenerate module case: nothing to reduce, return elementwise loss.
        x = logits.astype(jnp.float32)
        y = targets.astype(jnp.float32)
        return jnp.maximum(x, 0.0) - x * y + jnp.log1p(jnp.exp(-jnp.abs(x)))

    B = logits.shape[0]
    N = int(math.prod(logits.shape[1:]))

    # Native-dtype flattened views only; no astype / pad passes through HBM.
    x2 = logits.reshape(B, N)
    y2 = targets.reshape(B, N)

    vmem_cap = _vmem_capacity_bytes()
    tile_b, tile_n = _choose_tiles(B, N, x2.dtype.itemsize, y2.dtype.itemsize,
                                   vmem_cap)
    grid_b = _cdiv(B, tile_b)
    grid_n = _cdiv(N, tile_n)
    need_mask = (N % tile_n) != 0

    kernel = functools.partial(
        _bce_reduced_kernel,
        n_valid=N, tile_n=tile_n, grid_n=grid_n, need_mask=need_mask)

    # Double-buffered inputs + accumulator + output, with headroom; clamped
    # well below v7x's 64 MiB per-core VMEM.
    footprint = (2 * tile_b * tile_n * (x2.dtype.itemsize + y2.dtype.itemsize)
                 + tile_b * _CHUNK * 4 + tile_b * 4)
    vmem_limit = int(min(48 << 20, max(32 << 20, footprint + (16 << 20))))

    out2 = pl.pallas_call(
        kernel,
        out_shape=jax.ShapeDtypeStruct((B, 1), jnp.float32),
        grid_spec=pltpu.PrefetchScalarGridSpec(
            num_scalar_prefetch=0,
            grid=(grid_b, grid_n),
            in_specs=[
                pl.BlockSpec((tile_b, tile_n), lambda b, k: (b, k)),
                pl.BlockSpec((tile_b, tile_n), lambda b, k: (b, k)),
            ],
            out_specs=pl.BlockSpec((tile_b, 1), lambda b, k: (b, 0)),
            scratch_shapes=[pltpu.VMEM((tile_b, _CHUNK), jnp.float32)],
        ),
        compiler_params=pltpu.CompilerParams(
            dimension_semantics=("parallel", "arbitrary"),
            vmem_limit_bytes=vmem_limit,
        ),
    )(x2, y2)

    out_shape = (B,) + (1,) * (logits.ndim - 1)
    return out2.reshape(out_shape)


def _reference(logits, targets):
    x = logits.astype(jnp.float32)
    y = targets.astype(jnp.float32)
    loss = jnp.maximum(x, 0.0) - x * y + jnp.log1p(jnp.exp(-jnp.abs(x)))
    return jnp.mean(loss, axis=tuple(range(1, logits.ndim)), keepdims=True)


if __name__ == "__main__":
    key = jax.random.PRNGKey(0)
    k1, k2, k3, k4 = jax.random.split(key, 4)

    # Primary case: (B, C, H, W) = (2, 4, 16, 16), reduce over N = 1024.
    logits = jax.random.normal(k1, (2, 4, 16, 16), dtype=jnp.float32)
    targets = (jax.random.uniform(k2, (2, 4, 16, 16)) > 0.5).astype(jnp.float32)
    out = jax.block_until_ready(reduced_per_sample_bce(logits, targets))
    ref = _reference(logits, targets)
    assert out.shape == (2, 1, 1, 1), out.shape
    assert jnp.allclose(out, ref, rtol=1e-5, atol=1e-5), (out, ref)

    # Ragged case: N = 3*5*7 = 105 (not a multiple of 128) exercises the
    # in-kernel tail mask with no wrapper padding.
    logits2 = jax.random.normal(k3, (2, 3, 5, 7), dtype=jnp.float32)
    targets2 = (jax.random.uniform(k4, (2, 3, 5, 7)) > 0.5).astype(jnp.float32)
    out2 = jax.block_until_ready(reduced_per_sample_bce(logits2, targets2))
    ref2 = _reference(logits2, targets2)
    assert out2.shape == (2, 1, 1, 1), out2.shape
    assert jnp.allclose(out2, ref2, rtol=1e-5, atol=1e-5), (out2, ref2)

    print("KERNEL_OK")
</pallas_src>

<mosaic_0001>
module attributes {stable_mosaic.version = 11 : i64} {
  func.func @_bce_reduced_kernel(%arg0: i32, %arg1: i32, %arg2: memref<8x1024xf32, #tpu.memory_space<vmem>>, %arg3: memref<8x1024xf32, #tpu.memory_space<vmem>>, %arg4: memref<8x1xf32, #tpu.memory_space<vmem>>, %arg5: memref<8x128xf32, #tpu.memory_space<vmem>>) attributes {dimension_semantics = [#tpu.dimension_semantics<parallel>, #tpu.dimension_semantics<arbitrary>], iteration_bounds = array<i64: 1, 1>, scalar_prefetch = 0 : i64, scratch_operands = 1 : i64, tpu.core_type = #tpu.core_type<tc>, window_params = [{transform_indices = @transform_0, window_bounds = array<i64: 8, 1024>}, {transform_indices = @transform_1, window_bounds = array<i64: 8, 1024>}, {transform_indices = @transform_2, window_bounds = array<i64: 8, 1>}]} {
    %c0_i32 = arith.constant 0 : i32
    %0 = arith.cmpi eq, %arg1, %c0_i32 : i32
    %1 = arith.extui %0 : i1 to i32
    %c0_i32_0 = arith.constant 0 : i32
    %2 = arith.cmpi ne, %1, %c0_i32_0 : i32
    scf.if %2 {
      %cst_46 = arith.constant 0.000000e+00 : f32
      %112 = vector.broadcast %cst_46 : f32 to vector<8x128xf32>
      %c0_47 = arith.constant 0 : index
      %c0_48 = arith.constant 0 : index
      %113 = vector.load %arg5[%c0_47, %c0_48] : memref<8x128xf32, #tpu.memory_space<vmem>>, vector<8x128xf32>
      tpu.vector_store %arg5[%c0_47, %c0_48], %112 {strides = array<i32>} : memref<8x128xf32, #tpu.memory_space<vmem>>, vector<8x128xf32>,
    } else {
    }
    %c0 = arith.constant 0 : index
    %c0_1 = arith.constant 0 : index
    %3 = vector.load %arg2[%c0, %c0_1] : memref<8x1024xf32, #tpu.memory_space<vmem>>, vector<8x128xf32>
    %c0_2 = arith.constant 0 : index
    %c0_3 = arith.constant 0 : index
    %4 = vector.load %arg3[%c0_2, %c0_3] : memref<8x1024xf32, #tpu.memory_space<vmem>>, vector<8x128xf32>
    %cst = arith.constant 0.000000e+00 : f32
    %5 = vector.broadcast %cst : f32 to vector<8x128xf32>
    %6 = arith.maximumf %3, %5 : vector<8x128xf32>
    %7 = arith.mulf %3, %4 : vector<8x128xf32>
    %8 = arith.subf %6, %7 : vector<8x128xf32>
    %9 = math.absf %3 : vector<8x128xf32>
    %cst_4 = arith.constant 0.000000e+00 : f32
    %10 = vector.broadcast %cst_4 : f32 to vector<8x128xf32>
    %11 = arith.subf %10, %9 : vector<8x128xf32>
    %12 = math.exp %11 : vector<8x128xf32>
    %13 = math.log1p %12 : vector<8x128xf32>
    %14 = arith.addf %8, %13 : vector<8x128xf32>
    %c0_5 = arith.constant 0 : index
    %c128 = arith.constant 128 : index
    %15 = vector.load %arg2[%c0_5, %c128] : memref<8x1024xf32, #tpu.memory_space<vmem>>, vector<8x128xf32>
    %c0_6 = arith.constant 0 : index
    %c128_7 = arith.constant 128 : index
    %16 = vector.load %arg3[%c0_6, %c128_7] : memref<8x1024xf32, #tpu.memory_space<vmem>>, vector<8x128xf32>
    %cst_8 = arith.constant 0.000000e+00 : f32
    %17 = vector.broadcast %cst_8 : f32 to vector<8x128xf32>
    %18 = arith.maximumf %15, %17 : vector<8x128xf32>
    %19 = arith.mulf %15, %16 : vector<8x128xf32>
    %20 = arith.subf %18, %19 : vector<8x128xf32>
    %21 = math.absf %15 : vector<8x128xf32>
    %cst_9 = arith.constant 0.000000e+00 : f32
    %22 = vector.broadcast %cst_9 : f32 to vector<8x128xf32>
    %23 = arith.subf %22, %21 : vector<8x128xf32>
    %24 = math.exp %23 : vector<8x128xf32>
    %25 = math.log1p %24 : vector<8x128xf32>
    %26 = arith.addf %20, %25 : vector<8x128xf32>
    %27 = arith.addf %14, %26 : vector<8x128xf32>
    %c0_10 = arith.constant 0 : index
    %c256 = arith.constant 256 : index
    %28 = vector.load %arg2[%c0_10, %c256] : memref<8x1024xf32, #tpu.memory_space<vmem>>, vector<8x128xf32>
    %c0_11 = arith.constant 0 : index
    %c256_12 = arith.constant 256 : index
    %29 = vector.load %arg3[%c0_11, %c256_12] : memref<8x1024xf32, #tpu.memory_space<vmem>>, vector<8x128xf32>
    %cst_13 = arith.constant 0.000000e+00 : f32
    %30 = vector.broadcast %cst_13 : f32 to vector<8x128xf32>
    %31 = arith.maximumf %28, %30 : vector<8x128xf32>
    %32 = arith.mulf %28, %29 : vector<8x128xf32>
    %33 = arith.subf %31, %32 : vector<8x128xf32>
    %34 = math.absf %28 : vector<8x128xf32>
    %cst_14 = arith.constant 0.000000e+00 : f32
    %35 = vector.broadcast %cst_14 : f32 to vector<8x128xf32>
    %36 = arith.subf %35, %34 : vector<8x128xf32>
    %37 = math.exp %36 : vector<8x128xf32>
    %38 = math.log1p %37 : vector<8x128xf32>
    %39 = arith.addf %33, %38 : vector<8x128xf32>
    %40 = arith.addf %27, %39 : vector<8x128xf32>
    %c0_15 = arith.constant 0 : index
    %c384 = arith.constant 384 : index
    %41 = vector.load %arg2[%c0_15, %c384] : memref<8x1024xf32, #tpu.memory_space<vmem>>, vector<8x128xf32>
    %c0_16 = arith.constant 0 : index
    %c384_17 = arith.constant 384 : index
    %42 = vector.load %arg3[%c0_16, %c384_17] : memref<8x1024xf32, #tpu.memory_space<vmem>>, vector<8x128xf32>
    %cst_18 = arith.constant 0.000000e+00 : f32
    %43 = vector.broadcast %cst_18 : f32 to vector<8x128xf32>
    %44 = arith.maximumf %41, %43 : vector<8x128xf32>
    %45 = arith.mulf %41, %42 : vector<8x128xf32>
    %46 = arith.subf %44, %45 : vector<8x128xf32>
    %47 = math.absf %41 : vector<8x128xf32>
    %cst_19 = arith.constant 0.000000e+00 : f32
    %48 = vector.broadcast %cst_19 : f32 to vector<8x128xf32>
    %49 = arith.subf %48, %47 : vector<8x128xf32>
    %50 = math.exp %49 : vector<8x128xf32>
    %51 = math.log1p %50 : vector<8x128xf32>
    %52 = arith.addf %46, %51 : vector<8x128xf32>
    %53 = arith.addf %40, %52 : vector<8x128xf32>
    %c0_20 = arith.constant 0 : index
    %c512 = arith.constant 512 : index
    %54 = vector.load %arg2[%c0_20, %c512] : memref<8x1024xf32, #tpu.memory_space<vmem>>, vector<8x128xf32>
    %c0_21 = arith.constant 0 : index
    %c512_22 = arith.constant 512 : index
    %55 = vector.load %arg3[%c0_21, %c512_22] : memref<8x1024xf32, #tpu.memory_space<vmem>>, vector<8x128xf32>
    %cst_23 = arith.constant 0.000000e+00 : f32
    %56 = vector.broadcast %cst_23 : f32 to vector<8x128xf32>
    %57 = arith.maximumf %54, %56 : vector<8x128xf32>
    %58 = arith.mulf %54, %55 : vector<8x128xf32>
    %59 = arith.subf %57, %58 : vector<8x128xf32>
    %60 = math.absf %54 : vector<8x128xf32>
    %cst_24 = arith.constant 0.000000e+00 : f32
    %61 = vector.broadcast %cst_24 : f32 to vector<8x128xf32>
    %62 = arith.subf %61, %60 : vector<8x128xf32>
    %63 = math.exp %62 : vector<8x128xf32>
    %64 = math.log1p %63 : vector<8x128xf32>
    %65 = arith.addf %59, %64 : vector<8x128xf32>
    %66 = arith.addf %53, %65 : vector<8x128xf32>
    %c0_25 = arith.constant 0 : index
    %c640 = arith.constant 640 : index
    %67 = vector.load %arg2[%c0_25, %c640] : memref<8x1024xf32, #tpu.memory_space<vmem>>, vector<8x128xf32>
    %c0_26 = arith.constant 0 : index
    %c640_27 = arith.constant 640 : index
    %68 = vector.load %arg3[%c0_26, %c640_27] : memref<8x1024xf32, #tpu.memory_space<vmem>>, vector<8x128xf32>
    %cst_28 = arith.constant 0.000000e+00 : f32
    %69 = vector.broadcast %cst_28 : f32 to vector<8x128xf32>
    %70 = arith.maximumf %67, %69 : vector<8x128xf32>
    %71 = arith.mulf %67, %68 : vector<8x128xf32>
    %72 = arith.subf %70, %71 : vector<8x128xf32>
    %73 = math.absf %67 : vector<8x128xf32>
    %cst_29 = arith.constant 0.000000e+00 : f32
    %74 = vector.broadcast %cst_29 : f32 to vector<8x128xf32>
    %75 = arith.subf %74, %73 : vector<8x128xf32>
    %76 = math.exp %75 : vector<8x128xf32>
    %77 = math.log1p %76 : vector<8x128xf32>
    %78 = arith.addf %72, %77 : vector<8x128xf32>
    %79 = arith.addf %66, %78 : vector<8x128xf32>
    %c0_30 = arith.constant 0 : index
    %c768 = arith.constant 768 : index
    %80 = vector.load %arg2[%c0_30, %c768] : memref<8x1024xf32, #tpu.memory_space<vmem>>, vector<8x128xf32>
    %c0_31 = arith.constant 0 : index
    %c768_32 = arith.constant 768 : index
    %81 = vector.load %arg3[%c0_31, %c768_32] : memref<8x1024xf32, #tpu.memory_space<vmem>>, vector<8x128xf32>
    %cst_33 = arith.constant 0.000000e+00 : f32
    %82 = vector.broadcast %cst_33 : f32 to vector<8x128xf32>
    %83 = arith.maximumf %80, %82 : vector<8x128xf32>
    %84 = arith.mulf %80, %81 : vector<8x128xf32>
    %85 = arith.subf %83, %84 : vector<8x128xf32>
    %86 = math.absf %80 : vector<8x128xf32>
    %cst_34 = arith.constant 0.000000e+00 : f32
    %87 = vector.broadcast %cst_34 : f32 to vector<8x128xf32>
    %88 = arith.subf %87, %86 : vector<8x128xf32>
    %89 = math.exp %88 : vector<8x128xf32>
    %90 = math.log1p %89 : vector<8x128xf32>
    %91 = arith.addf %85, %90 : vector<8x128xf32>
    %92 = arith.addf %79, %91 : vector<8x128xf32>
    %c0_35 = arith.constant 0 : index
    %c896 = arith.constant 896 : index
    %93 = vector.load %arg2[%c0_35, %c896] : memref<8x1024xf32, #tpu.memory_space<vmem>>, vector<8x128xf32>
    %c0_36 = arith.constant 0 : index
    %c896_37 = arith.constant 896 : index
    %94 = vector.load %arg3[%c0_36, %c896_37] : memref<8x1024xf32, #tpu.memory_space<vmem>>, vector<8x128xf32>
    %cst_38 = arith.constant 0.000000e+00 : f32
    %95 = vector.broadcast %cst_38 : f32 to vector<8x128xf32>
    %96 = arith.maximumf %93, %95 : vector<8x128xf32>
    %97 = arith.mulf %93, %94 : vector<8x128xf32>
    %98 = arith.subf %96, %97 : vector<8x128xf32>
    %99 = math.absf %93 : vector<8x128xf32>
    %cst_39 = arith.constant 0.000000e+00 : f32
    %100 = vector.broadcast %cst_39 : f32 to vector<8x128xf32>
    %101 = arith.subf %100, %99 : vector<8x128xf32>
    %102 = math.exp %101 : vector<8x128xf32>
    %103 = math.log1p %102 : vector<8x128xf32>
    %104 = arith.addf %98, %103 : vector<8x128xf32>
    %105 = arith.addf %92, %104 : vector<8x128xf32>
    %c0_40 = arith.constant 0 : index
    %c0_41 = arith.constant 0 : index
    %106 = vector.load %arg5[%c0_40, %c0_41] : memref<8x128xf32, #tpu.memory_space<vmem>>, vector<8x128xf32>
    %107 = arith.addf %106, %105 : vector<8x128xf32>
    %c0_42 = arith.constant 0 : index
    %c0_43 = arith.constant 0 : index
    %108 = vector.load %arg5[%c0_42, %c0_43] : memref<8x128xf32, #tpu.memory_space<vmem>>, vector<8x128xf32>
    tpu.vector_store %arg5[%c0_42, %c0_43], %107 {strides = array<i32>} : memref<8x128xf32, #tpu.memory_space<vmem>>, vector<8x128xf32>,
    %c0_i32_44 = arith.constant 0 : i32
    %109 = arith.cmpi eq, %arg1, %c0_i32_44 : i32
    %110 = arith.extui %109 : i1 to i32
    %c0_i32_45 = arith.constant 0 : i32
    %111 = arith.cmpi ne, %110, %c0_i32_45 : i32
    scf.if %111 {
      %c0_46 = arith.constant 0 : index
      %c0_47 = arith.constant 0 : index
      %112 = vector.load %arg5[%c0_46, %c0_47] : memref<8x128xf32, #tpu.memory_space<vmem>>, vector<8x128xf32>
      %cst_48 = arith.constant dense<0.000000e+00> : vector<8xf32>
      %113 = vector.multi_reduction <add>, %112, %cst_48 [1] : vector<8x128xf32> to vector<8xf32>
      %114 = vector.shape_cast %113 : vector<8xf32> to vector<8x1xf32>
      %cst_49 = arith.constant 9.765625E-4 : f32
      %115 = vector.broadcast %cst_49 : f32 to vector<8x1xf32>
      %116 = arith.mulf %114, %115 : vector<8x1xf32>
      %c0_50 = arith.constant 0 : index
      %c0_51 = arith.constant 0 : index
      %117 = vector.load %arg4[%c0_50, %c0_51] : memref<8x1xf32, #tpu.memory_space<vmem>>, vector<8x1xf32>
      tpu.vector_store %arg4[%c0_50, %c0_51], %116 {strides = array<i32>} : memref<8x1xf32, #tpu.memory_space<vmem>>, vector<8x1xf32>,
    } else {
    }
    return
  }
  func.func @transform_0(%arg0: i32, %arg1: i32) -> (i32, i32) {
    %c0_i32 = arith.constant 0 : i32
    return %arg0, %arg1 : i32, i32
  }
  func.func @transform_1(%arg0: i32, %arg1: i32) -> (i32, i32) {
    %c0_i32 = arith.constant 0 : i32
    return %arg0, %arg1 : i32, i32
  }
  func.func @transform_2(%arg0: i32, %arg1: i32) -> (i32, i32) {
    %c0_i32 = arith.constant 0 : i32
    %c0_i32_0 = arith.constant 0 : i32
    return %arg0, %c0_i32 : i32, i32
  }
}

</mosaic_0001>

<llo_original>
// kernel: reduced_per_sample_bce.1
$region0: #{reduced_per_sample_bce.1}
  #allocation0 [shape = 'u32[]', space=smem, size = 0x4, offset = 0x4, fixed_abs, tag = 'smem constant byte address 0x4 - core index']
  #allocation1 [shape = 'u32[72,128]{1,0:T(1,128)}', space=vmem, size = 0x9000, scoped, tag = 'internal scratch']
  #allocation2 [shape = 'f32[8,128]{1,0:T(8,128)}', space=vmem, size = 0x1000, scoped, tag = 'scratch operand']
  %s0 = inlined_call_operand.vmem [shape: f32[2,1024], index: 0, kind: input, shape index: {}]
  %s1 = inlined_call_operand.vmem [shape: f32[2,1024], index: 1, kind: input, shape index: {}]
  %s2 = inlined_call_operand.vmem [shape: f32[2,1], index: 2, kind: output, shape index: {}]
  %s3 = sld [smem:[#allocation0]]
  $region56: #{reduced_per_sample_bce.1} parent=0
    _
  %s5 = ssub.s32 1, %s3
  %s6 = scalar_select 0, %s5, %s3
  $region1: #{reduced_per_sample_bce.1} parent=0
    #allocation3 [shape = 'u8[4096]{0}', space=vmem, size = 0x1000, scoped, tag = 'output window, operand 0, single buffered']
    // Predicated region
    $region2: #{reduced_per_sample_bce.1} parent=1 // pred_check
      _
    $region3: #{reduced_per_sample_bce.1} parent=1 // pred_check_branch
      %8 = sbr.rel (0) target = $region5
    $region4: #{reduced_per_sample_bce.1} parent=1 // pred_region
      _
    $region5: #{reduced_per_sample_bce.1} parent=1 // pred_fallthru
      _
    // Predicated region
    $region6: #{reduced_per_sample_bce.1} parent=1 // pred_check
      _
    $region7: #{reduced_per_sample_bce.1} parent=1 // pred_check_branch
      %10 = sbr.rel (0) target = $region9
    $region8: #{reduced_per_sample_bce.1} parent=1 // pred_region
      _
    $region9: #{reduced_per_sample_bce.1} parent=1 // pred_fallthru
      _
    %p11 = scmp.eq.s32.totalorder 0, 0
    // Predicated region
    $region10: #{reduced_per_sample_bce.1} parent=1 // pred_check
      %p12 = pneg %p11
    $region11: #{reduced_per_sample_bce.1} parent=1 // pred_check_branch
      %14 = sbr.rel (%p12) target = $region13
    $region12: #{reduced_per_sample_bce.1} parent=1 // pred_region
      %15 = vst [vmem:[#allocation2] sm:$0xff] 0.0
    $region13: #{reduced_per_sample_bce.1} parent=1 // pred_fallthru
      _
    %v16 = vld [vmem:[%s0] sm:$0x3]
    %v17 = vld [vmem:[%s0 + $0x10] sm:$0x3]
    %v18 = vld [vmem:[%s0 + $0x20] sm:$0x3]
    %v19 = vld [vmem:[%s0 + $0x30] sm:$0x3]
    %v20 = vld [vmem:[%s1] sm:$0x3]
    %v21 = vld [vmem:[%s1 + $0x10] sm:$0x3]
    %v22 = vld [vmem:[%s1 + $0x20] sm:$0x3]
    %v23 = vld [vmem:[%s1 + $0x30] sm:$0x3]
    %v24 = vmax.f32 %v16, 0.0
    %v25 = vmax.f32 %v17, 0.0
    %v26 = vmax.f32 %v18, 0.0
    %v27 = vmax.f32 %v19, 0.0
    %v28 = vmul.f32 %v16, %v20
    %v29 = vmul.f32 %v17, %v21
    %v30 = vmul.f32 %v18, %v22
    %v31 = vmul.f32 %v19, %v23
    %v32 = vsub.f32 %v24, %v28
    %v33 = vsub.f32 %v25, %v29
    %v34 = vsub.f32 %v26, %v30
    %v35 = vsub.f32 %v27, %v31
    %v36 = vand.u32 2147483647, %v16
    %v37 = vand.u32 2147483647, %v17
    %v38 = vand.u32 2147483647, %v18
    %v39 = vand.u32 2147483647, %v19
    %v40 = vsub.f32 0.0, %v36
    %v41 = vsub.f32 0.0, %v37
    %v42 = vsub.f32 0.0, %v38
    %v43 = vsub.f32 0.0, %v39
    %v44 = vmul.f32 %v40, 1.442695
    %v45 = vpow.pop %v44
    %v46 = vmul.f32 %v41, 1.442695
    %v47 = vpow.pop %v46
    %v48 = vmul.f32 %v42, 1.442695
    %v49 = vpow.pop %v48
    %v50 = vmul.f32 %v43, 1.442695
    %v51 = vpow.pop %v50
    %v52 = vadd.f32 %v45, 1.0
    %v53 = vlog2.pop %v52
    %v54 = vmul.f32 %v53, 0.6931472
    %v55 = vmul.f32 -0.5, %v45
    %v56 = vadd.f32 %v55, 1.0
    %v57 = vmul.f32 %v56, %v45
    %v58 = vand.u32 2147483647, %v45
    %vm59 = vcmp.lt.f32.partialorder %v58, 0.0004427343
    %v60 = vsel %vm59, %v57, %v54
    %v61 = vadd.f32 %v47, 1.0
    %v62 = vlog2.pop %v61
    %v63 = vmul.f32 %v62, 0.6931472
    %v64 = vmul.f32 -0.5, %v47
    %v65 = vadd.f32 %v64, 1.0
    %v66 = vmul.f32 %v65, %v47
    %v67 = vand.u32 2147483647, %v47
    %vm68 = vcmp.lt.f32.partialorder %v67, 0.0004427343
    %v69 = vsel %vm68, %v66, %v63
    %v70 = vadd.f32 %v49, 1.0
    %v71 = vlog2.pop %v70
    %v72 = vmul.f32 %v71, 0.6931472
    %v73 = vmul.f32 -0.5, %v49
    %v74 = vadd.f32 %v73, 1.0
    %v75 = vmul.f32 %v74, %v49
    %v76 = vand.u32 2147483647, %v49
    %vm77 = vcmp.lt.f32.partialorder %v76, 0.0004427343
    %v78 = vsel %vm77, %v75, %v72
    %v79 = vadd.f32 %v51, 1.0
    %v80 = vlog2.pop %v79
    %v81 = vmul.f32 %v80, 0.6931472
    %v82 = vmul.f32 -0.5, %v51
    %v83 = vadd.f32 %v82, 1.0
    %v84 = vmul.f32 %v83, %v51
    %v85 = vand.u32 2147483647, %v51
    %vm86 = vcmp.lt.f32.partialorder %v85, 0.0004427343
    %v87 = vsel %vm86, %v84, %v81
    %v88 = vadd.f32 %v32, %v60
    %v89 = vadd.f32 %v33, %v69
    %v90 = vadd.f32 %v34, %v78
    %v91 = vadd.f32 %v35, %v87
    %v92 = vld [vmem:[%s0 + $0x2] sm:$0x3]
    %v93 = vld [vmem:[%s0 + $0x12] sm:$0x3]
    %v94 = vld [vmem:[%s0 + $0x22] sm:$0x3]
    %v95 = vld [vmem:[%s0 + $0x32] sm:$0x3]
    %v96 = vld [vmem:[%s1 + $0x2] sm:$0x3]
    %v97 = vld [vmem:[%s1 + $0x12] sm:$0x3]
    %v98 = vld [vmem:[%s1 + $0x22] sm:$0x3]
    %v99 = vld [vmem:[%s1 + $0x32] sm:$0x3]
    %v100 = vmax.f32 %v92, 0.0
    %v101 = vmax.f32 %v93, 0.0
    %v102 = vmax.f32 %v94, 0.0
    %v103 = vmax.f32 %v95, 0.0
    %v104 = vmul.f32 %v92, %v96
    %v105 = vmul.f32 %v93, %v97
    %v106 = vmul.f32 %v94, %v98
    %v107 = vmul.f32 %v95, %v99
    %v108 = vsub.f32 %v100, %v104
    %v109 = vsub.f32 %v101, %v105
    %v110 = vsub.f32 %v102, %v106
    %v111 = vsub.f32 %v103, %v107
    %v112 = vand.u32 2147483647, %v92
    %v113 = vand.u32 2147483647, %v93
    %v114 = vand.u32 2147483647, %v94
    %v115 = vand.u32 2147483647, %v95
    %v116 = vsub.f32 0.0, %v112
    %v117 = vsub.f32 0.0, %v113
    %v118 = vsub.f32 0.0, %v114
    %v119 = vsub.f32 0.0, %v115
    %v120 = vmul.f32 %v116, 1.442695
    %v121 = vpow.pop %v120
    %v122 = vmul.f32 %v117, 1.442695
    %v123 = vpow.pop %v122
    %v124 = vmul.f32 %v118, 1.442695
    %v125 = vpow.pop %v124
    %v126 = vmul.f32 %v119, 1.442695
    %v127 = vpow.pop %v126
    %v128 = vadd.f32 %v121, 1.0
    %v129 = vlog2.pop %v128
    %v130 = vmul.f32 %v129, 0.6931472
    %v131 = vmul.f32 -0.5, %v121
    %v132 = vadd.f32 %v131, 1.0
    %v133 = vmul.f32 %v132, %v121
    %v134 = vand.u32 2147483647, %v121
    %vm135 = vcmp.lt.f32.partialorder %v134, 0.0004427343
    %v136 = vsel %vm135, %v133, %v130
    %v137 = vadd.f32 %v123, 1.0
    %v138 = vlog2.pop %v137
    %v139 = vmul.f32 %v138, 0.6931472
    %v140 = vmul.f32 -0.5, %v123
    %v141 = vadd.f32 %v140, 1.0
    %v142 = vmul.f32 %v141, %v123
    %v143 = vand.u32 2147483647, %v123
    %vm144 = vcmp.lt.f32.partialorder %v143, 0.0004427343
    %v145 = vsel %vm144, %v142, %v139
    %v146 = vadd.f32 %v125, 1.0
    %v147 = vlog2.pop %v146
    %v148 = vmul.f32 %v147, 0.6931472
    %v149 = vmul.f32 -0.5, %v125
    %v150 = vadd.f32 %v149, 1.0
    %v151 = vmul.f32 %v150, %v125
    %v152 = vand.u32 2147483647, %v125
    %vm153 = vcmp.lt.f32.partialorder %v152, 0.0004427343
    %v154 = vsel %vm153, %v151, %v148
    %v155 = vadd.f32 %v127, 1.0
    %v156 = vlog2.pop %v155
    %v157 = vmul.f32 %v156, 0.6931472
    %v158 = vmul.f32 -0.5, %v127
    %v159 = vadd.f32 %v158, 1.0
    %v160 = vmul.f32 %v159, %v127
    %v161 = vand.u32 2147483647, %v127
    %vm162 = vcmp.lt.f32.partialorder %v161, 0.0004427343
    %v163 = vsel %vm162, %v160, %v157
    %v164 = vadd.f32 %v108, %v136
    %v165 = vadd.f32 %v109, %v145
    %v166 = vadd.f32 %v110, %v154
    %v167 = vadd.f32 %v111, %v163
    %v168 = vadd.f32 %v88, %v164
    %v169 = vadd.f32 %v89, %v165
    %v170 = vadd.f32 %v90, %v166
    %v171 = vadd.f32 %v91, %v167
    %v172 = vld [vmem:[%s0 + $0x4] sm:$0x3]
    %v173 = vld [vmem:[%s0 + $0x14] sm:$0x3]
    %v174 = vld [vmem:[%s0 + $0x24] sm:$0x3]
    %v175 = vld [vmem:[%s0 + $0x34] sm:$0x3]
    %v176 = vld [vmem:[%s1 + $0x4] sm:$0x3]
    %v177 = vld [vmem:[%s1 + $0x14] sm:$0x3]
    %v178 = vld [vmem:[%s1 + $0x24] sm:$0x3]
    %v179 = vld [vmem:[%s1 + $0x34] sm:$0x3]
    %v180 = vmax.f32 %v172, 0.0
    %v181 = vmax.f32 %v173, 0.0
    %v182 = vmax.f32 %v174, 0.0
    %v183 = vmax.f32 %v175, 0.0
    %v184 = vmul.f32 %v172, %v176
    %v185 = vmul.f32 %v173, %v177
    %v186 = vmul.f32 %v174, %v178
    %v187 = vmul.f32 %v175, %v179
    %v188 = vsub.f32 %v180, %v184
    %v189 = vsub.f32 %v181, %v185
    %v190 = vsub.f32 %v182, %v186
    %v191 = vsub.f32 %v183, %v187
    %v192 = vand.u32 2147483647, %v172
    %v193 = vand.u32 2147483647, %v173
    %v194 = vand.u32 2147483647, %v174
    %v195 = vand.u32 2147483647, %v175
    %v196 = vsub.f32 0.0, %v192
    %v197 = vsub.f32 0.0, %v193
    %v198 = vsub.f32 0.0, %v194
    %v199 = vsub.f32 0.0, %v195
    %v200 = vmul.f32 %v196, 1.442695
    %v201 = vpow.pop %v200
    %v202 = vmul.f32 %v197, 1.442695
    %v203 = vpow.pop %v202
    %v204 = vmul.f32 %v198, 1.442695
    %v205 = vpow.pop %v204
    %v206 = vmul.f32 %v199, 1.442695
    %v207 = vpow.pop %v206
    %v208 = vadd.f32 %v201, 1.0
    %v209 = vlog2.pop %v208
    %v210 = vmul.f32 %v209, 0.6931472
    %v211 = vmul.f32 -0.5, %v201
    %v212 = vadd.f32 %v211, 1.0
    %v213 = vmul.f32 %v212, %v201
    %v214 = vand.u32 2147483647, %v201
    %vm215 = vcmp.lt.f32.partialorder %v214, 0.0004427343
    %v216 = vsel %vm215, %v213, %v210
    %v217 = vadd.f32 %v203, 1.0
    %v218 = vlog2.pop %v217
    %v219 = vmul.f32 %v218, 0.6931472
    %v220 = vmul.f32 -0.5, %v203
    %v221 = vadd.f32 %v220, 1.0
    %v222 = vmul.f32 %v221, %v203
    %v223 = vand.u32 2147483647, %v203
    %vm224 = vcmp.lt.f32.partialorder %v223, 0.0004427343
    %v225 = vsel %vm224, %v222, %v219
    %v226 = vadd.f32 %v205, 1.0
    %v227 = vlog2.pop %v226
    %v228 = vmul.f32 %v227, 0.6931472
    %v229 = vmul.f32 -0.5, %v205
    %v230 = vadd.f32 %v229, 1.0
    %v231 = vmul.f32 %v230, %v205
    %v232 = vand.u32 2147483647, %v205
    %vm233 = vcmp.lt.f32.partialorder %v232, 0.0004427343
    %v234 = vsel %vm233, %v231, %v228
    %v235 = vadd.f32 %v207, 1.0
    %v236 = vlog2.pop %v235
    %v237 = vmul.f32 %v236, 0.6931472
    %v238 = vmul.f32 -0.5, %v207
    %v239 = vadd.f32 %v238, 1.0
    %v240 = vmul.f32 %v239, %v207
    %v241 = vand.u32 2147483647, %v207
    %vm242 = vcmp.lt.f32.partialorder %v241, 0.0004427343
    %v243 = vsel %vm242, %v240, %v237
    %v244 = vadd.f32 %v188, %v216
    %v245 = vadd.f32 %v189, %v225
    %v246 = vadd.f32 %v190, %v234
    %v247 = vadd.f32 %v191, %v243
    %v248 = vadd.f32 %v168, %v244
    %v249 = vadd.f32 %v169, %v245
    %v250 = vadd.f32 %v170, %v246
    %v251 = vadd.f32 %v171, %v247
    %v252 = vld [vmem:[%s0 + $0x6] sm:$0x3]
    %v253 = vld [vmem:[%s0 + $0x16] sm:$0x3]
    %v254 = vld [vmem:[%s0 + $0x26] sm:$0x3]
    %v255 = vld [vmem:[%s0 + $0x36] sm:$0x3]
    %v256 = vld [vmem:[%s1 + $0x6] sm:$0x3]
    %v257 = vld [vmem:[%s1 + $0x16] sm:$0x3]
    %v258 = vld [vmem:[%s1 + $0x26] sm:$0x3]
    %v259 = vld [vmem:[%s1 + $0x36] sm:$0x3]
    %v260 = vmax.f32 %v252, 0.0
    %v261 = vmax.f32 %v253, 0.0
    %v262 = vmax.f32 %v254, 0.0
    %v263 = vmax.f32 %v255, 0.0
    %v264 = vmul.f32 %v252, %v256
    %v265 = vmul.f32 %v253, %v257
    %v266 = vmul.f32 %v254, %v258
    %v267 = vmul.f32 %v255, %v259
    %v268 = vsub.f32 %v260, %v264
    %v269 = vsub.f32 %v261, %v265
    %v270 = vsub.f32 %v262, %v266
    %v271 = vsub.f32 %v263, %v267
    %v272 = vand.u32 2147483647, %v252
    %v273 = vand.u32 2147483647, %v253
    %v274 = vand.u32 2147483647, %v254
    %v275 = vand.u32 2147483647, %v255
    %v276 = vsub.f32 0.0, %v272
    %v277 = vsub.f32 0.0, %v273
    %v278 = vsub.f32 0.0, %v274
    %v279 = vsub.f32 0.0, %v275
    %v280 = vmul.f32 %v276, 1.442695
    %v281 = vpow.pop %v280
    %v282 = vmul.f32 %v277, 1.442695
    %v283 = vpow.pop %v282
    %v284 = vmul.f32 %v278, 1.442695
    %v285 = vpow.pop %v284
    %v286 = vmul.f32 %v279, 1.442695
    %v287 = vpow.pop %v286
    %v288 = vadd.f32 %v281, 1.0
    %v289 = vlog2.pop %v288
    %v290 = vmul.f32 %v289, 0.6931472
    %v291 = vmul.f32 -0.5, %v281
    %v292 = vadd.f32 %v291, 1.0
    %v293 = vmul.f32 %v292, %v281
    %v294 = vand.u32 2147483647, %v281
    %vm295 = vcmp.lt.f32.partialorder %v294, 0.0004427343
    %v296 = vsel %vm295, %v293, %v290
    %v297 = vadd.f32 %v283, 1.0
    %v298 = vlog2.pop %v297
    %v299 = vmul.f32 %v298, 0.6931472
    %v300 = vmul.f32 -0.5, %v283
    %v301 = vadd.f32 %v300, 1.0
    %v302 = vmul.f32 %v301, %v283
    %v303 = vand.u32 2147483647, %v283
    %vm304 = vcmp.lt.f32.partialorder %v303, 0.0004427343
    %v305 = vsel %vm304, %v302, %v299
    %v306 = vadd.f32 %v285, 1.0
    %v307 = vlog2.pop %v306
    %v308 = vmul.f32 %v307, 0.6931472
    %v309 = vmul.f32 -0.5, %v285
    %v310 = vadd.f32 %v309, 1.0
    %v311 = vmul.f32 %v310, %v285
    %v312 = vand.u32 2147483647, %v285
    %vm313 = vcmp.lt.f32.partialorder %v312, 0.0004427343
    %v314 = vsel %vm313, %v311, %v308
    %v315 = vadd.f32 %v287, 1.0
    %v316 = vlog2.pop %v315
    %v317 = vmul.f32 %v316, 0.6931472
    %v318 = vmul.f32 -0.5, %v287
    %v319 = vadd.f32 %v318, 1.0
    %v320 = vmul.f32 %v319, %v287
    %v321 = vand.u32 2147483647, %v287
    %vm322 = vcmp.lt.f32.partialorder %v321, 0.0004427343
    %v323 = vsel %vm322, %v320, %v317
    %v324 = vadd.f32 %v268, %v296
    %v325 = vadd.f32 %v269, %v305
    %v326 = vadd.f32 %v270, %v314
    %v327 = vadd.f32 %v271, %v323
    %v328 = vadd.f32 %v248, %v324
    %v329 = vadd.f32 %v249, %v325
    %v330 = vadd.f32 %v250, %v326
    %v331 = vadd.f32 %v251, %v327
    %v332 = vld [vmem:[%s0 + $0x8] sm:$0x3]
    %v333 = vld [vmem:[%s0 + $0x18] sm:$0x3]
    %v334 = vld [vmem:[%s0 + $0x28] sm:$0x3]
    %v335 = vld [vmem:[%s0 + $0x38] sm:$0x3]
    %v336 = vld [vmem:[%s1 + $0x8] sm:$0x3]
    %v337 = vld [vmem:[%s1 + $0x18] sm:$0x3]
    %v338 = vld [vmem:[%s1 + $0x28] sm:$0x3]
    %v339 = vld [vmem:[%s1 + $0x38] sm:$0x3]
    %v340 = vmax.f32 %v332, 0.0
    %v341 = vmax.f32 %v333, 0.0
    %v342 = vmax.f32 %v334, 0.0
    %v343 = vmax.f32 %v335, 0.0
    %v344 = vmul.f32 %v332, %v336
    %v345 = vmul.f32 %v333, %v337
    %v346 = vmul.f32 %v334, %v338
    %v347 = vmul.f32 %v335, %v339
    %v348 = vsub.f32 %v340, %v344
    %v349 = vsub.f32 %v341, %v345
    %v350 = vsub.f32 %v342, %v346
    %v351 = vsub.f32 %v343, %v347
    %v352 = vand.u32 2147483647, %v332
    %v353 = vand.u32 2147483647, %v333
    %v354 = vand.u32 2147483647, %v334
    %v355 = vand.u32 2147483647, %v335
    %v356 = vsub.f32 0.0, %v352
    %v357 = vsub.f32 0.0, %v353
    %v358 = vsub.f32 0.0, %v354
    %v359 = vsub.f32 0.0, %v355
    %v360 = vmul.f32 %v356, 1.442695
    %v361 = vpow.pop %v360
    %v362 = vmul.f32 %v357, 1.442695
    %v363 = vpow.pop %v362
    %v364 = vmul.f32 %v358, 1.442695
    %v365 = vpow.pop %v364
    %v366 = vmul.f32 %v359, 1.442695
    %v367 = vpow.pop %v366
    %v368 = vadd.f32 %v361, 1.0
    %v369 = vlog2.pop %v368
    %v370 = vmul.f32 %v369, 0.6931472
    %v371 = vmul.f32 -0.5, %v361
    %v372 = vadd.f32 %v371, 1.0
    %v373 = vmul.f32 %v372, %v361
    %v374 = vand.u32 2147483647, %v361
    %vm375 = vcmp.lt.f32.partialorder %v374, 0.0004427343
    %v376 = vsel %vm375, %v373, %v370
    %v377 = vadd.f32 %v363, 1.0
    %v378 = vlog2.pop %v377
    %v379 = vmul.f32 %v378, 0.6931472
    %v380 = vmul.f32 -0.5, %v363
    %v381 = vadd.f32 %v380, 1.0
    %v382 = vmul.f32 %v381, %v363
    %v383 = vand.u32 2147483647, %v363
    %vm384 = vcmp.lt.f32.partialorder %v383, 0.0004427343
    %v385 = vsel %vm384, %v382, %v379
    %v386 = vadd.f32 %v365, 1.0
    %v387 = vlog2.pop %v386
    %v388 = vmul.f32 %v387, 0.6931472
    %v389 = vmul.f32 -0.5, %v365
    %v390 = vadd.f32 %v389, 1.0
    %v391 = vmul.f32 %v390, %v365
    %v392 = vand.u32 2147483647, %v365
    %vm393 = vcmp.lt.f32.partialorder %v392, 0.0004427343
    %v394 = vsel %vm393, %v391, %v388
    %v395 = vadd.f32 %v367, 1.0
    %v396 = vlog2.pop %v395
    %v397 = vmul.f32 %v396, 0.6931472
    %v398 = vmul.f32 -0.5, %v367
    %v399 = vadd.f32 %v398, 1.0
    %v400 = vmul.f32 %v399, %v367
    %v401 = vand.u32 2147483647, %v367
    %vm402 = vcmp.lt.f32.partialorder %v401, 0.0004427343
    %v403 = vsel %vm402, %v400, %v397
    %v404 = vadd.f32 %v348, %v376
    %v405 = vadd.f32 %v349, %v385
    %v406 = vadd.f32 %v350, %v394
    %v407 = vadd.f32 %v351, %v403
    %v408 = vadd.f32 %v328, %v404
    %v409 = vadd.f32 %v329, %v405
    %v410 = vadd.f32 %v330, %v406
    %v411 = vadd.f32 %v331, %v407
    %v412 = vld [vmem:[%s0 + $0xa] sm:$0x3]
    %v413 = vld [vmem:[%s0 + $0x1a] sm:$0x3]
    %v414 = vld [vmem:[%s0 + $0x2a] sm:$0x3]
    %v415 = vld [vmem:[%s0 + $0x3a] sm:$0x3]
    %v416 = vld [vmem:[%s1 + $0xa] sm:$0x3]
    %v417 = vld [vmem:[%s1 + $0x1a] sm:$0x3]
    %v418 = vld [vmem:[%s1 + $0x2a] sm:$0x3]
    %v419 = vld [vmem:[%s1 + $0x3a] sm:$0x3]
    %v420 = vmax.f32 %v412, 0.0
    %v421 = vmax.f32 %v413, 0.0
    %v422 = vmax.f32 %v414, 0.0
    %v423 = vmax.f32 %v415, 0.0
    %v424 = vmul.f32 %v412, %v416
    %v425 = vmul.f32 %v413, %v417
    %v426 = vmul.f32 %v414, %v418
    %v427 = vmul.f32 %v415, %v419
    %v428 = vsub.f32 %v420, %v424
    %v429 = vsub.f32 %v421, %v425
    %v430 = vsub.f32 %v422, %v426
    %v431 = vsub.f32 %v423, %v427
    %v432 = vand.u32 2147483647, %v412
    %v433 = vand.u32 2147483647, %v413
    %v434 = vand.u32 2147483647, %v414
    %v435 = vand.u32 2147483647, %v415
    %v436 = vsub.f32 0.0, %v432
    %v437 = vsub.f32 0.0, %v433
    %v438 = vsub.f32 0.0, %v434
    %v439 = vsub.f32 0.0, %v435
    %v440 = vmul.f32 %v436, 1.442695
    %v441 = vpow.pop %v440
    %v442 = vmul.f32 %v437, 1.442695
    %v443 = vpow.pop %v442
    %v444 = vmul.f32 %v438, 1.442695
    %v445 = vpow.pop %v444
    %v446 = vmul.f32 %v439, 1.442695
    %v447 = vpow.pop %v446
    %v448 = vadd.f32 %v441, 1.0
    %v449 = vlog2.pop %v448
    %v450 = vmul.f32 %v449, 0.6931472
    %v451 = vmul.f32 -0.5, %v441
    %v452 = vadd.f32 %v451, 1.0
    %v453 = vmul.f32 %v452, %v441
    %v454 = vand.u32 2147483647, %v441
    %vm455 = vcmp.lt.f32.partialorder %v454, 0.0004427343
    %v456 = vsel %vm455, %v453, %v450
    %v457 = vadd.f32 %v443, 1.0
    %v458 = vlog2.pop %v457
    %v459 = vmul.f32 %v458, 0.6931472
    %v460 = vmul.f32 -0.5, %v443
    %v461 = vadd.f32 %v460, 1.0
    %v462 = vmul.f32 %v461, %v443
    %v463 = vand.u32 2147483647, %v443
    %vm464 = vcmp.lt.f32.partialorder %v463, 0.0004427343
    %v465 = vsel %vm464, %v462, %v459
    %v466 = vadd.f32 %v445, 1.0
    %v467 = vlog2.pop %v466
    %v468 = vmul.f32 %v467, 0.6931472
    %v469 = vmul.f32 -0.5, %v445
    %v470 = vadd.f32 %v469, 1.0
    %v471 = vmul.f32 %v470, %v445
    %v472 = vand.u32 2147483647, %v445
    %vm473 = vcmp.lt.f32.partialorder %v472, 0.0004427343
    %v474 = vsel %vm473, %v471, %v468
    %v475 = vadd.f32 %v447, 1.0
    %v476 = vlog2.pop %v475
    %v477 = vmul.f32 %v476, 0.6931472
    %v478 = vmul.f32 -0.5, %v447
    %v479 = vadd.f32 %v478, 1.0
    %v480 = vmul.f32 %v479, %v447
    %v481 = vand.u32 2147483647, %v447
    %vm482 = vcmp.lt.f32.partialorder %v481, 0.0004427343
    %v483 = vsel %vm482, %v480, %v477
    %v484 = vadd.f32 %v428, %v456
    %v485 = vadd.f32 %v429, %v465
    %v486 = vadd.f32 %v430, %v474
    %v487 = vadd.f32 %v431, %v483
    %v488 = vadd.f32 %v408, %v484
    %v489 = vadd.f32 %v409, %v485
    %v490 = vadd.f32 %v410, %v486
    %v491 = vadd.f32 %v411, %v487
    %v492 = vld [vmem:[%s0 + $0xc] sm:$0x3]
    %v493 = vld [vmem:[%s0 + $0x1c] sm:$0x3]
    %v494 = vld [vmem:[%s0 + $0x2c] sm:$0x3]
    %v495 = vld [vmem:[%s0 + $0x3c] sm:$0x3]
    %v496 = vld [vmem:[%s1 + $0xc] sm:$0x3]
    %v497 = vld [vmem:[%s1 + $0x1c] sm:$0x3]
    %v498 = vld [vmem:[%s1 + $0x2c] sm:$0x3]
    %v499 = vld [vmem:[%s1 + $0x3c] sm:$0x3]
    %v500 = vmax.f32 %v492, 0.0
    %v501 = vmax.f32 %v493, 0.0
    %v502 = vmax.f32 %v494, 0.0
    %v503 = vmax.f32 %v495, 0.0
    %v504 = vmul.f32 %v492, %v496
    %v505 = vmul.f32 %v493, %v497
    %v506 = vmul.f32 %v494, %v498
    %v507 = vmul.f32 %v495, %v499
    %v508 = vsub.f32 %v500, %v504
    %v509 = vsub.f32 %v501, %v505
    %v510 = vsub.f32 %v502, %v506
    %v511 = vsub.f32 %v503, %v507
    %v512 = vand.u32 2147483647, %v492
    %v513 = vand.u32 2147483647, %v493
    %v514 = vand.u32 2147483647, %v494
    %v515 = vand.u32 2147483647, %v495
    %v516 = vsub.f32 0.0, %v512
    %v517 = vsub.f32 0.0, %v513
    %v518 = vsub.f32 0.0, %v514
    %v519 = vsub.f32 0.0, %v515
    %v520 = vmul.f32 %v516, 1.442695
    %v521 = vpow.pop %v520
    %v522 = vmul.f32 %v517, 1.442695
    %v523 = vpow.pop %v522
    %v524 = vmul.f32 %v518, 1.442695
    %v525 = vpow.pop %v524
    %v526 = vmul.f32 %v519, 1.442695
    %v527 = vpow.pop %v526
    %v528 = vadd.f32 %v521, 1.0
    %v529 = vlog2.pop %v528
    %v530 = vmul.f32 %v529, 0.6931472
    %v531 = vmul.f32 -0.5, %v521
    %v532 = vadd.f32 %v531, 1.0
    %v533 = vmul.f32 %v532, %v521
    %v534 = vand.u32 2147483647, %v521
    %vm535 = vcmp.lt.f32.partialorder %v534, 0.0004427343
    %v536 = vsel %vm535, %v533, %v530
    %v537 = vadd.f32 %v523, 1.0
    %v538 = vlog2.pop %v537
    %v539 = vmul.f32 %v538, 0.6931472
    %v540 = vmul.f32 -0.5, %v523
    %v541 = vadd.f32 %v540, 1.0
    %v542 = vmul.f32 %v541, %v523
    %v543 = vand.u32 2147483647, %v523
    %vm544 = vcmp.lt.f32.partialorder %v543, 0.0004427343
    %v545 = vsel %vm544, %v542, %v539
    %v546 = vadd.f32 %v525, 1.0
    %v547 = vlog2.pop %v546
    %v548 = vmul.f32 %v547, 0.6931472
    %v549 = vmul.f32 -0.5, %v525
    %v550 = vadd.f32 %v549, 1.0
    %v551 = vmul.f32 %v550, %v525
    %v552 = vand.u32 2147483647, %v525
    %vm553 = vcmp.lt.f32.partialorder %v552, 0.0004427343
    %v554 = vsel %vm553, %v551, %v548
    %v555 = vadd.f32 %v527, 1.0
    %v556 = vlog2.pop %v555
    %v557 = vmul.f32 %v556, 0.6931472
    %v558 = vmul.f32 -0.5, %v527
    %v559 = vadd.f32 %v558, 1.0
    %v560 = vmul.f32 %v559, %v527
    %v561 = vand.u32 2147483647, %v527
    %vm562 = vcmp.lt.f32.partialorder %v561, 0.0004427343
    %v563 = vsel %vm562, %v560, %v557
    %v564 = vadd.f32 %v508, %v536
    %v565 = vadd.f32 %v509, %v545
    %v566 = vadd.f32 %v510, %v554
    %v567 = vadd.f32 %v511, %v563
    %v568 = vadd.f32 %v488, %v564
    %v569 = vadd.f32 %v489, %v565
    %v570 = vadd.f32 %v490, %v566
    %v571 = vadd.f32 %v491, %v567
    %v572 = vld [vmem:[%s0 + $0xe] sm:$0x3]
    %v573 = vld [vmem:[%s0 + $0x1e] sm:$0x3]
    %v574 = vld [vmem:[%s0 + $0x2e] sm:$0x3]
    %v575 = vld [vmem:[%s0 + $0x3e] sm:$0x3]
    %v576 = vld [vmem:[%s1 + $0xe] sm:$0x3]
    %v577 = vld [vmem:[%s1 + $0x1e] sm:$0x3]
    %v578 = vld [vmem:[%s1 + $0x2e] sm:$0x3]
    %v579 = vld [vmem:[%s1 + $0x3e] sm:$0x3]
    %v580 = vmax.f32 %v572, 0.0
    %v581 = vmax.f32 %v573, 0.0
    %v582 = vmax.f32 %v574, 0.0
    %v583 = vmax.f32 %v575, 0.0
    %v584 = vmul.f32 %v572, %v576
    %v585 = vmul.f32 %v573, %v577
    %v586 = vmul.f32 %v574, %v578
    %v587 = vmul.f32 %v575, %v579
    %v588 = vsub.f32 %v580, %v584
    %v589 = vsub.f32 %v581, %v585
    %v590 = vsub.f32 %v582, %v586
    %v591 = vsub.f32 %v583, %v587
    %v592 = vand.u32 2147483647, %v572
    %v593 = vand.u32 2147483647, %v573
    %v594 = vand.u32 2147483647, %v574
    %v595 = vand.u32 2147483647, %v575
    %v596 = vsub.f32 0.0, %v592
    %v597 = vsub.f32 0.0, %v593
    %v598 = vsub.f32 0.0, %v594
    %v599 = vsub.f32 0.0, %v595
    %v600 = vmul.f32 %v596, 1.442695
    %v601 = vpow.pop %v600
    %v602 = vmul.f32 %v597, 1.442695
    %v603 = vpow.pop %v602
    %v604 = vmul.f32 %v598, 1.442695
    %v605 = vpow.pop %v604
    %v606 = vmul.f32 %v599, 1.442695
    %v607 = vpow.pop %v606
    %v608 = vadd.f32 %v601, 1.0
    %v609 = vlog2.pop %v608
    %v610 = vmul.f32 %v609, 0.6931472
    %v611 = vmul.f32 -0.5, %v601
    %v612 = vadd.f32 %v611, 1.0
    %v613 = vmul.f32 %v612, %v601
    %v614 = vand.u32 2147483647, %v601
    %vm615 = vcmp.lt.f32.partialorder %v614, 0.0004427343
    %v616 = vsel %vm615, %v613, %v610
    %v617 = vadd.f32 %v603, 1.0
    %v618 = vlog2.pop %v617
    %v619 = vmul.f32 %v618, 0.6931472
    %v620 = vmul.f32 -0.5, %v603
    %v621 = vadd.f32 %v620, 1.0
    %v622 = vmul.f32 %v621, %v603
    %v623 = vand.u32 2147483647, %v603
    %vm624 = vcmp.lt.f32.partialorder %v623, 0.0004427343
    %v625 = vsel %vm624, %v622, %v619
    %v626 = vadd.f32 %v605, 1.0
    %v627 = vlog2.pop %v626
    %v628 = vmul.f32 %v627, 0.6931472
    %v629 = vmul.f32 -0.5, %v605
    %v630 = vadd.f32 %v629, 1.0
    %v631 = vmul.f32 %v630, %v605
    %v632 = vand.u32 2147483647, %v605
    %vm633 = vcmp.lt.f32.partialorder %v632, 0.0004427343
    %v634 = vsel %vm633, %v631, %v628
    %v635 = vadd.f32 %v607, 1.0
    %v636 = vlog2.pop %v635
    %v637 = vmul.f32 %v636, 0.6931472
    %v638 = vmul.f32 -0.5, %v607
    %v639 = vadd.f32 %v638, 1.0
    %v640 = vmul.f32 %v639, %v607
    %v641 = vand.u32 2147483647, %v607
    %vm642 = vcmp.lt.f32.partialorder %v641, 0.0004427343
    %v643 = vsel %vm642, %v640, %v637
    %v644 = vadd.f32 %v588, %v616
    %v645 = vadd.f32 %v589, %v625
    %v646 = vadd.f32 %v590, %v634
    %v647 = vadd.f32 %v591, %v643
    %v648 = vadd.f32 %v568, %v644
    %v649 = vadd.f32 %v569, %v645
    %v650 = vadd.f32 %v570, %v646
    %v651 = vadd.f32 %v571, %v647
    %v652 = vld [vmem:[#allocation2] sm:$0xff]
    %657 = vst [vmem:[#allocation1] ss:$4 sm:$0xff] %v648
    %s658 = scalar_lea.vmem [#allocation1], 1
    %659 = vst [vmem:[%s658] ss:$4 sm:$0xff] %v649
    %s660 = scalar_lea.vmem [#allocation1], 2
    %661 = vst [vmem:[%s660] ss:$4 sm:$0xff] %v650
    %s662 = scalar_lea.vmem [#allocation1], 3
    %663 = vst [vmem:[%s662] ss:$4 sm:$0xff] %v651
    %v664 = vld.sshfl [vmem:[#allocation1] sm:$0xff pattern:$0x73625140]
    %v666 = vadd.f32 %v652, %v664
    %667 = vst [vmem:[#allocation2] sm:$0xff] %v666
    // Predicated region
    $region14: #{reduced_per_sample_bce.1} parent=1 // pred_check
      %p668 = pneg %p11
    $region15: #{reduced_per_sample_bce.1} parent=1 // pred_check_branch
      %670 = sbr.rel (%p668) target = $region17
    $region16: #{reduced_per_sample_bce.1} parent=1 // pred_region
      %v671 = vld [vmem:[#allocation2] sm:$0xff]
      %672 = vadd.xlane.f32.xlu0 %v671
      %v673 = vpop.xlane.xlu0 %672
      %v674 = vmul.f32 %v673, 0.0009765625
      %vm675 = vcmask 7168
      %676 = vst.msk [vmem:[#allocation3] sm:$0xff] %vm675, %v674
    $region17: #{reduced_per_sample_bce.1} parent=1 // pred_fallthru
      _
    // Predicated region
    $region18: #{reduced_per_sample_bce.1} parent=1 // pred_check
      _
    $region19: #{reduced_per_sample_bce.1} parent=1 // pred_check_branch
      %678 = sbr.rel (0) target = $region21
    $region20: #{reduced_per_sample_bce.1} parent=1 // pred_region
      // Predicated region
      $region22: #{reduced_per_sample_bce.1} parent=20 // pred_check
        _
      $region23: #{reduced_per_sample_bce.1} parent=20 // pred_check_branch
        %680 = sbr.rel (0) target = $region25
      $region24: #{reduced_per_sample_bce.1} parent=20 // pred_region
        // Predicated region
        $region26: #{reduced_per_sample_bce.1} parent=24 // pred_check
          _
        $region27: #{reduced_per_sample_bce.1} parent=24 // pred_check_branch
          %682 = sbr.rel target = $region29
        $region28: #{reduced_per_sample_bce.1} parent=24 // pred_region
          // Predicated region
          $region41: #{reduced_per_sample_bce.1} parent=28 // pred_check
            _
          $region42: #{reduced_per_sample_bce.1} parent=28 // pred_check_branch
            %698 = sbr.rel (0) target = $region44
          $region43: #{reduced_per_sample_bce.1} parent=28 // pred_region
            %s700 = ssub.s32 4, 1
            loop: start=0, step=1, limit=1
            $region45: #{reduced_per_sample_bce.1} parent=43 // loop_pre_header
              _
            $region46: #{reduced_per_sample_bce.1} parent=43 // loop_header
              %s702 = sphi 0, %s706
              %p703 = scmp.ge.s32.totalorder %s702, 1
              %s707 = sphi [#allocation3], [#allocation3]
              %s708 = sphi %s2, %s2
            $region47: #{reduced_per_sample_bce.1} parent=43 // loop_header_branch
              %705 = sbr.rel (%p703) target = $region51
            $region48: #{reduced_per_sample_bce.1} parent=43 // loop_body
              %v709 = vld [vmem:[%s707] sm:%s700]
              %710 = vst [vmem:[%s708] sm:%s700] %v709
            $region49: #{reduced_per_sample_bce.1} parent=43 // loop_footer
              %s706 = sadd.s32 1, %s702
            $region50: #{reduced_per_sample_bce.1} parent=43 // loop_footer_branch
              %701 = sbr.rel target = $region46
            $region51: #{reduced_per_sample_bce.1} parent=43 // loop_exit
              _
          $region44: #{reduced_per_sample_bce.1} parent=28 // pred_fallthru
            _
        $region29: #{reduced_per_sample_bce.1} parent=24 // pred_fallthru
          _
        // Predicated region
        $region30: #{reduced_per_sample_bce.1} parent=24 // pred_check
          _
        $region31: #{reduced_per_sample_bce.1} parent=24 // pred_check_branch
          %684 = sbr.rel (0) target = $region33
        $region32: #{reduced_per_sample_bce.1} parent=24 // pred_region
          %s686 = ssub.s32 4, 1
          loop: start=0, step=1, limit=1
          $region34: #{reduced_per_sample_bce.1} parent=32 // loop_pre_header
            _
          $region35: #{reduced_per_sample_bce.1} parent=32 // loop_header
            %s688 = sphi 0, %s692
            %p689 = scmp.ge.s32.totalorder %s688, 1
            %s693 = sphi [#allocation3], [#allocation3]
            %s694 = sphi %s2, %s2
          $region36: #{reduced_per_sample_bce.1} parent=32 // loop_header_branch
            %691 = sbr.rel (%p689) target = $region40
          $region37: #{reduced_per_sample_bce.1} parent=32 // loop_body
            %v695 = vld [vmem:[%s693] sm:%s686]
            %696 = vst [vmem:[%s694] sm:%s686] %v695
          $region38: #{reduced_per_sample_bce.1} parent=32 // loop_footer
            %s692 = sadd.s32 1, %s688
          $region39: #{reduced_per_sample_bce.1} parent=32 // loop_footer_branch
            %687 = sbr.rel target = $region35
          $region40: #{reduced_per_sample_bce.1} parent=32 // loop_exit
            _
        $region33: #{reduced_per_sample_bce.1} parent=24 // pred_fallthru
          _
      $region25: #{reduced_per_sample_bce.1} parent=20 // pred_fallthru
        _
      %711 = vnop
    $region21: #{reduced_per_sample_bce.1} parent=1 // pred_fallthru
      _
    // Predicated region
    $region52: #{reduced_per_sample_bce.1} parent=1 // pred_check
      _
    $region53: #{reduced_per_sample_bce.1} parent=1 // pred_check_branch
      %713 = sbr.rel (0) target = $region55
    $region54: #{reduced_per_sample_bce.1} parent=1 // pred_region
      _
    $region55: #{reduced_per_sample_bce.1} parent=1 // pred_fallthru
      _

</llo_original>
